<compile_context>
chip_gen: v7x
topology: tpu7x:2x2x1
jax: 0.10.0
libtpu: 0.0.40
codegen_flags: <defaults>
</compile_context>

<pallas_src>
from functools import partial

import jax
import jax.numpy as jnp
from jax.experimental import pallas as pl
from jax.experimental.pallas import tpu as pltpu

_LANES = 128
_WIDE_LANES = 1024                 # preferred lane-dense width (8 full vregs wide)
_TARGET_BLOCK_BYTES = 2 * 1024 * 1024   # ~2 MiB per block (in+out double-buffered ~= 8 MiB VMEM)
_VMEM_LIMIT_BYTES = 32 * 1024 * 1024    # explicit limit: safe on v5e/v6e/v7x


def _identity_copy_kernel(x_ref, o_ref):
    # Module forward is `return x`; the kernel is a full-tile VMEM copy.
    o_ref[...] = x_ref[...]


def _pick_tile_rows(rows: int, row_bytes: int) -> int:
    """Pick a block row count: ~_TARGET_BLOCK_BYTES, multiple of 8, dividing rows if possible."""
    target = max(8, (_TARGET_BLOCK_BYTES // max(row_bytes, 1)) // 8 * 8)
    if rows <= target:
        # Small array: try to still give the v7x megacore >=2 grid steps when legal
        # (block rows must be a multiple of 8 unless the block spans the full array).
        if rows >= 16 and rows % 2 == 0 and (rows // 2) % 8 == 0:
            return rows // 2
        return rows  # single full-array block (tiny input)
    # Large array: largest multiple-of-8 tile <= target that divides rows (no masked tail).
    t = target
    while t >= 8:
        if rows % t == 0:
            return t
        t -= 8
    return target  # fall back: partial trailing block (handled by Pallas, perf-only cost)


@partial(jax.jit, static_argnames=("num_classes",))
def my_model_forward(x, num_classes: int = 10):
    """JAX/Pallas equivalent of MyModel(num_classes).forward(x).

    The reference module defines no layers/parameters and returns its input
    unchanged; `num_classes` is accepted for interface parity only.
    """
    # TODO(synk): MyModel.__init__ defines no architecture; the truly optimal path is `return x`
    # (zero HBM traffic). The Pallas kernel below is retained only as an explicit kernel boundary.
    size = int(x.size)

    # Fast path: empty or not lane-divisible -> a kernel can only add overhead; return x directly.
    if size == 0 or size % _LANES != 0:
        return x

    width = _WIDE_LANES if size % _WIDE_LANES == 0 else _LANES
    rows = size // width
    x2d = x.reshape(rows, width)  # lane-dense slab: last dim is a multiple of 128 lanes

    itemsize = jnp.dtype(x.dtype).itemsize
    tile_rows = _pick_tile_rows(rows, width * itemsize)
    grid = (pl.cdiv(rows, tile_rows),)

    out2d = pl.pallas_call(
        _identity_copy_kernel,
        out_shape=jax.ShapeDtypeStruct(x2d.shape, x2d.dtype),
        grid=grid,
        in_specs=[pl.BlockSpec((tile_rows, width), lambda i: (i, 0))],
        out_specs=pl.BlockSpec((tile_rows, width), lambda i: (i, 0)),
        compiler_params=pltpu.CompilerParams(
            dimension_semantics=("parallel",),   # shard row tiles across TCs (v7x megacore)
            vmem_limit_bytes=_VMEM_LIMIT_BYTES,  # portable headroom for the larger tiles (v5e default is 16 MiB)
        ),
        cost_estimate=pl.CostEstimate(
            flops=0,
            transcendentals=0,
            bytes_accessed=2 * size * itemsize,  # pure HBM read + write
        ),
    )(x2d)

    return out2d.reshape(x.shape)


if __name__ == "__main__":
    key = jax.random.PRNGKey(0)
    # NCHW input, consistent with a PyTorch conv-style model interface: 2048 elems -> (2, 1024) slab.
    x = jax.random.normal(key, (2, 4, 16, 16), dtype=jnp.float32)

    y = my_model_forward(x, num_classes=10)
    y = jax.block_until_ready(y)

    assert y.shape == x.shape and y.dtype == x.dtype
    assert bool(jnp.allclose(y, x)), "identity forward mismatch"
    print("KERNEL_OK")
</pallas_src>

<mosaic_0001>
module attributes {stable_mosaic.version = 11 : i64} {
  func.func @_identity_copy_kernel(%arg0: i32, %arg1: memref<2x1024xf32, #tpu.memory_space<vmem>>, %arg2: memref<2x1024xf32, #tpu.memory_space<vmem>>) attributes {dimension_semantics = [#tpu.dimension_semantics<parallel>], iteration_bounds = array<i64: 1>, scalar_prefetch = 0 : i64, scratch_operands = 0 : i64, tpu.core_type = #tpu.core_type<tc>, window_params = [{transform_indices = @transform_0, window_bounds = array<i64: 2, 1024>}, {transform_indices = @transform_1, window_bounds = array<i64: 2, 1024>}]} {
    %c0 = arith.constant 0 : index
    %c0_0 = arith.constant 0 : index
    %0 = vector.load %arg1[%c0, %c0_0] : memref<2x1024xf32, #tpu.memory_space<vmem>>, vector<2x1024xf32>
    %c0_1 = arith.constant 0 : index
    %c0_2 = arith.constant 0 : index
    %1 = vector.load %arg2[%c0_1, %c0_2] : memref<2x1024xf32, #tpu.memory_space<vmem>>, vector<2x1024xf32>
    tpu.vector_store %arg2[%c0_1, %c0_2], %0 {strides = array<i32>} : memref<2x1024xf32, #tpu.memory_space<vmem>>, vector<2x1024xf32>,
    return
  }
  func.func @transform_0(%arg0: i32) -> (i32, i32) {
    %c0_i32 = arith.constant 0 : i32
    %c0_i32_0 = arith.constant 0 : i32
    return %arg0, %c0_i32 : i32, i32
  }
  func.func @transform_1(%arg0: i32) -> (i32, i32) {
    %c0_i32 = arith.constant 0 : i32
    %c0_i32_0 = arith.constant 0 : i32
    return %arg0, %c0_i32 : i32, i32
  }
}

</mosaic_0001>

<llo_original>
// kernel: my_model_forward.1
$region0: #{my_model_forward.1}
  #allocation0 [shape = 'u32[]', space=smem, size = 0x4, offset = 0x4, fixed_abs, tag = 'smem constant byte address 0x4 - core index']
  #allocation1 [shape = 'u32[144,128]{1,0:T(1,128)}', space=vmem, size = 0x12000, scoped, tag = 'internal scratch']
  %s0 = inlined_call_operand.vmem [shape: f32[2,1024], index: 0, kind: input, shape index: {}]
  %s1 = inlined_call_operand.vmem [shape: f32[2,1024], index: 1, kind: output, shape index: {}]
  %s2 = sld [smem:[#allocation0]]
  $region14: #{my_model_forward.1} parent=0
    _
  %s4 = ssub.s32 1, %s2
  %s5 = scalar_select 0, %s4, %s2
  // Predicated region
  $region2: #{my_model_forward.1} parent=0 // pred_check
    _
  $region3: #{my_model_forward.1} parent=0 // pred_check_branch
    %7 = sbr.rel (0) target = $region5
  $region4: #{my_model_forward.1} parent=0 // pred_region
    _
  $region5: #{my_model_forward.1} parent=0 // pred_fallthru
    _
  %v8 = vld [vmem:[%s0] sm:$0xff]
  %v9 = vld [vmem:[%s0 + $0x8] sm:$0xff]
  %10 = vst [vmem:[%s1] sm:$0xff] %v8
  %11 = vst [vmem:[%s1 + $0x8] sm:$0xff] %v9
  // Predicated region
  $region6: #{my_model_forward.1} parent=0 // pred_check
    _
  $region7: #{my_model_forward.1} parent=0 // pred_check_branch
    %13 = sbr.rel (0) target = $region9
  $region8: #{my_model_forward.1} parent=0 // pred_region
    _
  $region9: #{my_model_forward.1} parent=0 // pred_fallthru
    _
  // Predicated region
  $region10: #{my_model_forward.1} parent=0 // pred_check
    _
  $region11: #{my_model_forward.1} parent=0 // pred_check_branch
    %15 = sbr.rel (0) target = $region13
  $region12: #{my_model_forward.1} parent=0 // pred_region
    _
  $region13: #{my_model_forward.1} parent=0 // pred_fallthru
    _

</llo_original>
